<compile_context>
chip_gen: v6e
topology: v6e:2x2x1
jax: 0.10.0
libtpu: 0.0.40
codegen_flags: <defaults>
</compile_context>

<pallas_src>
import functools

import jax
import jax.numpy as jnp
from jax import lax
from jax.experimental import pallas as pl
from jax.experimental.pallas import tpu as pltpu

_LANES = 128


def _round_up(a, b):
    return ((a + b - 1) // b) * b


def _vmem_limit(block_bytes):
    # in + out, double buffered = 4 live blocks, plus slack.  Capped so it is
    # safe on v7x (64 MiB physical) and well inside v5e/v6e (128 MiB).
    return int(min(max(4 * block_bytes + (2 << 20), 16 << 20), 96 << 20))


# ---------------------------------------------------------------------------
# Fast path: lane-dense flattened layout (B, D) -> (B*D/128, 128), dim | 128.
# ---------------------------------------------------------------------------
def _ring_flat_kernel(alpha_ref, x_ref, o_ref, *, radius, dim):
    """One (rows, 128) tile; each 128-lane row holds 128//dim states.

    Within each dim-lane group, lanes 0,1 are the planar ring coordinates and
    lanes 2.. are the residual dimensions.
    """
    alpha = alpha_ref[0]                                   # scalar f32 (SMEM)
    x = x_ref[...]                                         # (rows, 128) f32

    lane = lax.broadcasted_iota(jnp.int32, x.shape, 1)
    lane_mod = jnp.bitwise_and(lane, dim - 1)              # lane % dim (dim | 128)
    is_ring = lane_mod < 2

    # r^2 = x0^2 + x1^2 broadcast onto both ring lanes of every group.
    # Mask x^2 to the ring lanes, then add BOTH single-lane rotations: each
    # ring lane picks up exactly its partner (the lane on its other side has
    # lane_mod >= 2 and is masked to zero; requires dim >= 4), and the
    # construction is independent of the rotate sign convention.
    x2 = x * x
    m2 = jnp.where(is_ring, x2, 0.0)
    pair = m2 + pltpu.roll(m2, 1, 1) + pltpu.roll(m2, x.shape[1] - 1, 1)
    r = jnp.sqrt(pair)                                     # valid on ring lanes

    # dr_dt*cos(theta) = -alpha*(radius - r)*x0 (likewise y); residual: alpha*x.
    scale = jnp.where(is_ring, -alpha * (radius - r), alpha)
    o_ref[...] = (scale * x).astype(o_ref.dtype)

    # TODO(synk): vf_on_ring_enabled=True path (TrainablePeriodicFunction
    # angular perturbation + Gaussian bump) is not implemented; the module
    # default is vf_on_ring_enabled=False.


def _forward_flat(x, alpha, *, radius, target_block_bytes):
    B, D = x.shape
    states_per_row = _LANES // D
    b_pad = _round_up(B, states_per_row)
    if b_pad != B:
        # Rare remainder case: pads < 128/D extra (zero) states.
        x = jnp.pad(x, ((0, b_pad - B), (0, 0)))
    rows = (b_pad * D) // _LANES
    x_flat = jnp.reshape(x, (rows, _LANES))                # free contiguous reshape

    row_bytes = _LANES * 4
    target_rows = max(8, (target_block_bytes // row_bytes) // 8 * 8)
    tile_rows = rows if rows <= target_rows else target_rows
    grid = (pl.cdiv(rows, tile_rows),)
    block_bytes = tile_rows * row_bytes

    n_elem = b_pad * D
    cost = pl.CostEstimate(flops=8 * n_elem, transcendentals=n_elem,
                           bytes_accessed=2 * n_elem * 4)

    kernel = functools.partial(_ring_flat_kernel, radius=radius, dim=D)
    out_flat = pl.pallas_call(
        kernel,
        out_shape=jax.ShapeDtypeStruct((rows, _LANES), jnp.float32),
        grid=grid,
        in_specs=[
            pl.BlockSpec(memory_space=pltpu.MemorySpace.SMEM),    # alpha scalar
            pl.BlockSpec((tile_rows, _LANES), lambda i: (i, 0)),  # state rows
        ],
        out_specs=pl.BlockSpec((tile_rows, _LANES), lambda i: (i, 0)),
        compiler_params=pltpu.CompilerParams(
            # TODO(synk): on v7x, confirm in the trace that the row grid is
            # split across both TensorCores; if not, add an explicit
            # CORE_PARALLEL leading grid axis.
            dimension_semantics=("parallel",),
            vmem_limit_bytes=_vmem_limit(block_bytes),
        ),
        cost_estimate=cost,
    )(alpha, x_flat)

    out = jnp.reshape(out_flat, (b_pad, D))                # free reshape back
    if b_pad != B:
        out = out[:B]
    return out


# ---------------------------------------------------------------------------
# Fallback path for dims that do not divide 128 (e.g. 2, 3, 5, ...):
# (dim, batch) transposed layout, batch on lanes.
# ---------------------------------------------------------------------------
def _ring_kernel_transposed(alpha_ref, xt_ref, o_ref, *, radius, dim):
    alpha = alpha_ref[0]
    x = xt_ref[...]                                        # (dim, T)
    x0 = x[0:1, :]
    x1 = x[1:2, :]
    r = jnp.sqrt(x0 * x0 + x1 * x1)                        # (1, T)
    ring_scale = -alpha * (radius - r)                     # (1, T)
    row = lax.broadcasted_iota(jnp.int32, x.shape, 0)
    scale = jnp.where(row < 2, ring_scale, alpha)          # single fused select
    o_ref[...] = (scale * x).astype(o_ref.dtype)           # one unmasked store


def _forward_transposed(x, alpha, *, radius, target_block_bytes):
    B, D = x.shape
    # NOTE: callers inside an integrator loop should keep the state in (D, B)
    # layout permanently so this transpose is paid once, not per step.
    xt = jnp.transpose(x)                                  # (D, B)
    col_bytes = D * 4
    if B * col_bytes <= target_block_bytes:
        tile_b = B                                         # single full block
    else:
        tile_b = max(_LANES,
                     (target_block_bytes // col_bytes) // _LANES * _LANES)
    grid = (pl.cdiv(B, tile_b),)
    block_bytes = tile_b * col_bytes

    cost = pl.CostEstimate(flops=8 * B * D, transcendentals=B,
                           bytes_accessed=2 * B * D * 4)

    kernel = functools.partial(_ring_kernel_transposed, radius=radius, dim=D)
    out_t = pl.pallas_call(
        kernel,
        out_shape=jax.ShapeDtypeStruct((D, B), jnp.float32),
        grid=grid,
        in_specs=[
            pl.BlockSpec(memory_space=pltpu.MemorySpace.SMEM),
            pl.BlockSpec((D, tile_b), lambda i: (0, i)),
        ],
        out_specs=pl.BlockSpec((D, tile_b), lambda i: (0, i)),
        compiler_params=pltpu.CompilerParams(
            dimension_semantics=("parallel",),
            vmem_limit_bytes=_vmem_limit(block_bytes),
        ),
        cost_estimate=cost,
    )(alpha, xt)
    return jnp.transpose(out_t)


# ---------------------------------------------------------------------------
# Public wrapper
# ---------------------------------------------------------------------------
def learnable_nd_ring_attractor_forward(x, alpha, *, radius,
                                        target_block_bytes=8 << 20):
    """x: (B, D) f32 (or (D,)), alpha: (1,) f32  ->  dx/dt, same shape as x."""
    squeeze = x.ndim == 1
    if squeeze:
        x = x[None, :]
    x = x.astype(jnp.float32)
    alpha = jnp.asarray(alpha, dtype=jnp.float32).reshape((1,))
    B, D = x.shape
    assert D >= 2, "Dimension must be at least 2."

    if D >= 4 and _LANES % D == 0:
        out = _forward_flat(x, alpha, radius=radius,
                            target_block_bytes=target_block_bytes)
    else:
        out = _forward_transposed(x, alpha, radius=radius,
                                  target_block_bytes=target_block_bytes)
    return out[0] if squeeze else out


def _reference_forward(x, alpha, *, radius):
    """Pure-JAX reference mirroring the PyTorch forward (vf_on_ring disabled)."""
    x_val, y_val = x[:, 0], x[:, 1]
    r = jnp.sqrt(x_val ** 2 + y_val ** 2)
    theta = jnp.arctan2(y_val, x_val)
    dr_dt = -alpha * r * (radius - r)
    dx_dt = (dr_dt * jnp.cos(theta))[:, None]
    dy_dt = (dr_dt * jnp.sin(theta))[:, None]
    parts = [dx_dt, dy_dt]
    if x.shape[1] > 2:
        parts.append(alpha * x[:, 2:])
    return jnp.concatenate(parts, axis=1)


if __name__ == "__main__":
    # Module configuration (deterministic, in-script "init").
    radius = 1.0
    alpha_init = -1.0                                  # learnable scalar
    alpha = jnp.array([alpha_init], dtype=jnp.float32)

    key = jax.random.PRNGKey(0)
    checks = [
        (256, 8),   # fast flattened lane-dense path, B*D % 128 == 0
        (100, 8),   # fast path with a small remainder (pad branch)
        (64, 2),    # fallback (dim, batch) transposed path
    ]
    for batch, dim in checks:
        key, sub = jax.random.split(key)
        x = jax.random.normal(sub, (batch, dim), dtype=jnp.float32)
        out = jax.block_until_ready(
            learnable_nd_ring_attractor_forward(x, alpha, radius=radius))
        ref = _reference_forward(x, jnp.float32(alpha_init), radius=radius)
        assert out.shape == (batch, dim)
        assert jnp.allclose(out, ref, atol=1e-5, rtol=1e-5), \
            f"mismatch vs reference for (batch={batch}, dim={dim})"

    print("KERNEL_OK")
</pallas_src>

<mosaic_0001>
module attributes {stable_mosaic.version = 11 : i64} {
  func.func @_ring_flat_kernel(%arg0: i32, %arg1: memref<1xf32, #tpu.memory_space<smem>>, %arg2: memref<16x128xf32, #tpu.memory_space<vmem>>, %arg3: memref<16x128xf32, #tpu.memory_space<vmem>>) attributes {dimension_semantics = [#tpu.dimension_semantics<parallel>], iteration_bounds = array<i64: 1>, scalar_prefetch = 0 : i64, scratch_operands = 0 : i64, tpu.core_type = #tpu.core_type<tc>, window_params = [{transform_indices = @transform_0, window_bounds = array<i64: 1>}, {transform_indices = @transform_1, window_bounds = array<i64: 16, 128>}, {transform_indices = @transform_2, window_bounds = array<i64: 16, 128>}]} {
    %c0 = arith.constant 0 : index
    %0 = memref.load %arg1[%c0] : memref<1xf32, #tpu.memory_space<smem>>
    %c0_0 = arith.constant 0 : index
    %c0_1 = arith.constant 0 : index
    %1 = vector.load %arg2[%c0_0, %c0_1] : memref<16x128xf32, #tpu.memory_space<vmem>>, vector<16x128xf32>
    %2 = tpu.iota {dimensions = array<i32: 1>} : vector<16x128xi32>
    %c7_i32 = arith.constant 7 : i32
    %3 = vector.broadcast %c7_i32 : i32 to vector<16x128xi32>
    %4 = arith.andi %2, %3 : vector<16x128xi32>
    %c2_i32 = arith.constant 2 : i32
    %5 = vector.broadcast %c2_i32 : i32 to vector<16x128xi32>
    %6 = arith.cmpi slt, %4, %5 : vector<16x128xi32>
    %7 = arith.mulf %1, %1 : vector<16x128xf32>
    %cst = arith.constant 0.000000e+00 : f32
    %8 = vector.broadcast %cst : f32 to vector<16x128xf32>
    %9 = arith.select %6, %7, %8 : vector<16x128xi1>, vector<16x128xf32>
    %c1_i32 = arith.constant 1 : i32
    %10 = tpu.dynamic_rotate %9 by %c1_i32 dim 1 : vector<16x128xf32>, i32 -> vector<16x128xf32>
    %11 = arith.addf %9, %10 : vector<16x128xf32>
    %c127_i32 = arith.constant 127 : i32
    %12 = tpu.dynamic_rotate %9 by %c127_i32 dim 1 : vector<16x128xf32>, i32 -> vector<16x128xf32>
    %13 = arith.addf %11, %12 : vector<16x128xf32>
    %14 = math.sqrt %13 : vector<16x128xf32>
    %cst_2 = arith.constant 0.000000e+00 : f32
    %15 = arith.subf %cst_2, %0 : f32
    %cst_3 = arith.constant 1.000000e+00 : f32
    %16 = vector.broadcast %cst_3 : f32 to vector<16x128xf32>
    %17 = arith.subf %16, %14 : vector<16x128xf32>
    %18 = vector.broadcast %15 : f32 to vector<16x128xf32>
    %19 = arith.mulf %18, %17 : vector<16x128xf32>
    %20 = vector.broadcast %0 : f32 to vector<16x128xf32>
    %21 = arith.select %6, %19, %20 : vector<16x128xi1>, vector<16x128xf32>
    %22 = arith.mulf %21, %1 : vector<16x128xf32>
    %c0_4 = arith.constant 0 : index
    %c0_5 = arith.constant 0 : index
    %23 = vector.load %arg3[%c0_4, %c0_5] : memref<16x128xf32, #tpu.memory_space<vmem>>, vector<16x128xf32>
    tpu.vector_store %arg3[%c0_4, %c0_5], %22 {strides = array<i32>} : memref<16x128xf32, #tpu.memory_space<vmem>>, vector<16x128xf32>,
    return
  }
  func.func @transform_0(%arg0: i32) -> i32 {
    %c0_i32 = arith.constant 0 : i32
    %c0_i32_0 = arith.constant 0 : i32
    return %c0_i32 : i32
  }
  func.func @transform_1(%arg0: i32) -> (i32, i32) {
    %c0_i32 = arith.constant 0 : i32
    %c0_i32_0 = arith.constant 0 : i32
    return %arg0, %c0_i32 : i32, i32
  }
  func.func @transform_2(%arg0: i32) -> (i32, i32) {
    %c0_i32 = arith.constant 0 : i32
    %c0_i32_0 = arith.constant 0 : i32
    return %arg0, %c0_i32 : i32, i32
  }
}

</mosaic_0001>

<llo_original>
// kernel: tpu_custom_call.1
$region0: #{tpu_custom_call.1}
  #allocation0 [shape = 'u32[]', space=smem, size = 0x4, offset = 0x4, fixed_abs, tag = 'smem constant byte address 0x4 - core index']
  #allocation1 [shape = 'u32[144,128]{1,0:T(1,128)}', space=vmem, size = 0x12000, scoped, tag = 'internal scratch']
  #allocation2 [shape = 'f32[1]{0:T(128)S(6)}', space=smem, size = 0x200, scoped, tag = 'scoped memory for tpu_custom_call.1']
  %s0 = inlined_call_operand.<no memory space> [shape: f32[1], index: 0, kind: input, shape index: {}]
  %s1 = inlined_call_operand.hbm [shape: f32[16,128], index: 1, kind: input, shape index: {}]
  %s2 = inlined_call_operand.hbm [shape: f32[16,128], index: 2, kind: output, shape index: {}]
  %s3 = sld [smem:[#allocation0]]
  $region22: #{tpu_custom_call.1} parent=0
    _
  %s5 = ssub.s32 1, %s3
  %s6 = scalar_select 0, %s5, %s3
  %7 = sst [smem:[#allocation2]] %s0
  $region1: #{tpu_custom_call.1} parent=0
    #allocation3 [shape = 'u8[8192]{0}', space=vmem, size = 0x2000, scoped, tag = 'input window, operand 1, single buffered']
    #allocation4 [shape = 's32[1]{0}', space=sflag, size = 0x4, scoped, tag = 'scoped memory for tpu_custom_call.1']
    #allocation5 [shape = 's32[1]{0}', space=sflag, size = 0x4, scoped, tag = 'scoped memory for tpu_custom_call.1']
    #allocation6 [shape = 'u8[8192]{0}', space=vmem, size = 0x2000, scoped, tag = 'output window, operand 0, single buffered']
    %8 = vsyncpa [#allocation4], 0
    %9 = vsyncpa [#allocation5], 0
    // Predicated region
    $region2: #{tpu_custom_call.1} parent=1 // pred_check
      _
    $region3: #{tpu_custom_call.1} parent=1 // pred_check_branch
      %11 = sbr.rel (0) target = $region5
    $region4: #{tpu_custom_call.1} parent=1 // pred_region
      _
    $region5: #{tpu_custom_call.1} parent=1 // pred_fallthru
      _
    // Predicated region
    $region6: #{tpu_custom_call.1} parent=1 // pred_check
      _
    $region7: #{tpu_custom_call.1} parent=1 // pred_check_branch
      %13 = sbr.rel (0) target = $region9
    $region8: #{tpu_custom_call.1} parent=1 // pred_region
      %s15 = ssub.s32 256, 256
      %16 = vsyncadd [#allocation4], %s15
      %s17 = sshll.u32 [#allocation3], 4
      %s18 = int_to_ptr.vmem [resolvable:$true] %s17
      %23 = dma.hbm_to_vmem [thread:$0]  %s1, 256, %s18, [#allocation4], 128, 128, 8
    $region9: #{tpu_custom_call.1} parent=1 // pred_fallthru
      _
    // Predicated region
    $region10: #{tpu_custom_call.1} parent=1 // pred_check
      _
    $region11: #{tpu_custom_call.1} parent=1 // pred_check_branch
      %25 = sbr.rel (0) target = $region13
    $region12: #{tpu_custom_call.1} parent=1 // pred_region
      %26 = dma.done [#allocation4], 256
    $region13: #{tpu_custom_call.1} parent=1 // pred_fallthru
      _
    %s27 = sld [smem:[#allocation2]]
    %v28 = vld [vmem:[#allocation3] sm:$0xff]
    %v29 = vld [vmem:[#allocation3 + $0x8] sm:$0xff]
    %v30 = vlaneseq
    %v31 = vand.u32 %v30, 127
    %v32 = vand.u32 %v31, 7
    %vm33 = vcmp.lt.s32.totalorder %v32, 2
    %v34 = vmul.f32 %v28, %v28
    %v35 = vmul.f32 %v29, %v29
    %v36 = vsel %vm33, %v34, 0.0
    %v37 = vsel %vm33, %v35, 0.0
    %38 = vrot.lane.b32.xlu0 %v36, 1
    %v39 = vpop.permute.xlu0 %38
    %40 = vrot.lane.b32.xlu0 %v37, 1
    %v41 = vpop.permute.xlu0 %40
    %v42 = vadd.f32 %v36, %v39
    %v43 = vadd.f32 %v37, %v41
    %44 = vrot.lane.b32.xlu0 %v36, 127
    %v45 = vpop.permute.xlu0 %44
    %46 = vrot.lane.b32.xlu0 %v37, 127
    %v47 = vpop.permute.xlu0 %46
    %v48 = vadd.f32 %v42, %v45
    %v49 = vadd.f32 %v43, %v47
    %v50 = vrsqrt.pop %v48
    %v51 = vmul.f32 %v48, %v50
    %vm52 = vcmp.eq.f32.partialorder %v48, inf
    %v53 = vsel %vm52, %v48, %v51
    %vm54 = vcmp.eq.f32.partialorder %v48, 0.0
    %v55 = vand.u32 %v48, 2147483648
    %v56 = vsel %vm54, %v55, %v53
    %v57 = vrsqrt.pop %v49
    %v58 = vmul.f32 %v49, %v57
    %vm59 = vcmp.eq.f32.partialorder %v49, inf
    %v60 = vsel %vm59, %v49, %v58
    %vm61 = vcmp.eq.f32.partialorder %v49, 0.0
    %v62 = vand.u32 %v49, 2147483648
    %v63 = vsel %vm61, %v62, %v60
    %s64 = ssub.f32 0.0, %s27
    %v65 = vsub.f32 1.0, %v56
    %v66 = vsub.f32 1.0, %v63
    %v67 = vstv %s64
    %v68 = vmul.f32 %v67, %v65
    %v69 = vmul.f32 %v67, %v66
    %v70 = vstv %s27
    %v71 = vsel %vm33, %v68, %v70
    %v72 = vsel %vm33, %v69, %v70
    %v73 = vmul.f32 %v71, %v28
    %v74 = vmul.f32 %v72, %v29
    %75 = vst [vmem:[#allocation6] sm:$0xff] %v73
    %76 = vst [vmem:[#allocation6 + $0x8] sm:$0xff] %v74
    // Predicated region
    $region14: #{tpu_custom_call.1} parent=1 // pred_check
      _
    $region15: #{tpu_custom_call.1} parent=1 // pred_check_branch
      %78 = sbr.rel (0) target = $region17
    $region16: #{tpu_custom_call.1} parent=1 // pred_region
      %s80 = ssub.s32 256, 256
      %81 = vsyncadd [#allocation5], %s80
      %s82 = sshll.u32 [#allocation6], 4
      %s83 = int_to_ptr.vmem [resolvable:$true] %s82
      %88 = dma.vmem_to_hbm [thread:$0]  %s83, 256, %s2, [#allocation5], 128, 128, 8
    $region17: #{tpu_custom_call.1} parent=1 // pred_fallthru
      _
    // Predicated region
    $region18: #{tpu_custom_call.1} parent=1 // pred_check
      _
    $region19: #{tpu_custom_call.1} parent=1 // pred_check_branch
      %90 = sbr.rel (0) target = $region21
    $region20: #{tpu_custom_call.1} parent=1 // pred_region
      %91 = dma.done [#allocation5], 256
    $region21: #{tpu_custom_call.1} parent=1 // pred_fallthru
      _
    %92 = vsyncpa [#allocation4], 1
    %93 = vsyncpa [#allocation5], 1

</llo_original>
